<compile_context>
chip_gen: v6e
topology: v6e:2x2x1
jax: 0.10.0
libtpu: 0.0.40
codegen_flags: <defaults>
</compile_context>

<pallas_src>
import functools

import jax
import jax.numpy as jnp
from jax.experimental import pallas as pl
from jax.experimental.pallas import tpu as pltpu


_EPS = 1e-5


def _gelu_exact(x):
    # PyTorch nn.GELU default: 0.5 * x * (1 + erf(x / sqrt(2)))
    return 0.5 * x * (1.0 + jax.lax.erf(x * 0.7071067811865476))


def _layer_norm(x, gamma, beta):
    mu = jnp.mean(x, axis=-1, keepdims=True)
    var = jnp.mean((x - mu) ** 2, axis=-1, keepdims=True)
    return (x - mu) * jax.lax.rsqrt(var + _EPS) * gamma + beta


def _tpu_budgets():
    """(vmem_limit_bytes, big_vmem) per TPU generation.

    v5e/v6e have 128 MiB VMEM per core, v7x has 64 MiB.  Leave ~20% headroom for
    compiler-internal scratch / semaphores instead of pinning the limit at the
    physical size; fall back to a conservative 64 MiB-class budget if the query
    fails.
    """
    phys = 64 * 1024 * 1024
    try:
        phys = int(pltpu.get_tpu_info().vmem_capacity_bytes)
    except Exception:
        pass
    return int(phys * 0.8), phys >= 96 * 1024 * 1024


# --------------------------- kernel A: LN1 + QKV ----------------------------
def _ln_qkv_kernel(x_ref, g1_ref, be1_ref, wqkv_ref, bqkv_ref,
                   xn_ref, q_ref, k_ref, v_ref, *, scale, num_heads, dh, d_model):
    x = x_ref[0]                                       # (TS, D) f32
    xn = _layer_norm(x, g1_ref[...], be1_ref[...])     # f32 VPU math
    xn_ref[0] = xn.astype(xn_ref.dtype)                # residual base, stored bf16
    xnb = xn.astype(jnp.bfloat16)                      # bf16 only at MXU inputs
    # One fused (TS,D)x(D,3D) matmul instead of three: single weight stream.
    qkv = jnp.dot(xnb, wqkv_ref[...],
                  preferred_element_type=jnp.float32) + bqkv_ref[...]
    # Emit q/k/v head-major via static lane slices (hidden under the matmul);
    # no XLA-side split_heads afterwards.  1/sqrt(dh) folded into Q.
    for h in range(num_heads):
        lo = h * dh
        q_ref[0, h] = (qkv[:, lo:lo + dh] * scale).astype(jnp.bfloat16)
        k_ref[0, h] = qkv[:, d_model + lo:d_model + lo + dh].astype(jnp.bfloat16)
        v_ref[0, h] = qkv[:, 2 * d_model + lo:2 * d_model + lo + dh].astype(jnp.bfloat16)


# -------------------- kernel B: flash multi-head attention ------------------
def _flash_attn_kernel(q_ref, k_ref, v_ref, o_ref, m_sc, l_sc, acc_sc,
                       *, num_heads, dh):
    kv = pl.program_id(2)

    @pl.when(kv == 0)
    def _():
        m_sc[...] = jnp.full(m_sc.shape, -jnp.inf, jnp.float32)
        l_sc[...] = jnp.zeros(l_sc.shape, jnp.float32)
        acc_sc[...] = jnp.zeros(acc_sc.shape, jnp.float32)

    q = q_ref[0]                                       # (H, TQ, dh) bf16, pre-scaled
    k = k_ref[0]                                       # (H, TK, dh) bf16
    v = v_ref[0]                                       # (H, TK, dh) bf16
    # NOTE: with dh=64 the exp (EUP) can saturate before the MXU on v6e/v7x;
    # prefer dh=128 model configs where possible.
    s = jnp.einsum("hqd,hkd->hqk", q, k, preferred_element_type=jnp.float32)

    m_prev = m_sc[...]
    m_new = jnp.maximum(m_prev, jnp.max(s, axis=-1, keepdims=True))
    alpha = jnp.exp(m_prev - m_new)
    p = jnp.exp(s - m_new)
    l_sc[...] = alpha * l_sc[...] + jnp.sum(p, axis=-1, keepdims=True)
    acc_sc[...] = alpha * acc_sc[...] + jnp.einsum(
        "hqk,hkd->hqd", p.astype(jnp.bfloat16), v,
        preferred_element_type=jnp.float32)
    m_sc[...] = m_new
    # (m/l scratches keep last-dim-1 shape; lane-dense (H,TQ,128) padding is a
    #  small further win once the VPU/XLU slot is the binding unit.)

    @pl.when(kv == pl.num_programs(2) - 1)
    def _():
        # approx reciprocal sits on the EUP slot (free); swap to exact if tighter
        # than ~1e-3 relative accuracy is ever required.
        inv_l = pl.reciprocal(l_sc[...], approx=True)
        out = acc_sc[...] * inv_l                      # (H, TQ, dh) f32
        # Merge heads in-kernel: write the (TQ, D) block lane-slice by lane-slice;
        # no XLA transpose/reshape on the attention output.
        for h in range(num_heads):
            lo = h * dh
            o_ref[0, :, lo:lo + dh] = out[h].astype(o_ref.dtype)


# --------- kernel C: out-proj + residual + LN2 + GELU MLP + residual --------
def _out_mlp_kernel(attn_ref, xn_ref, wo_ref, bo_ref, g2_ref, be2_ref,
                    w1_ref, b1_ref, w2_ref, b2_ref, o_ref, x2_sc, x2b_sc, ff_sc):
    hi = pl.program_id(2)

    @pl.when(hi == 0)
    def _():
        msa = jnp.dot(attn_ref[0], wo_ref[...],
                      preferred_element_type=jnp.float32) + bo_ref[...]
        x1 = xn_ref[0].astype(jnp.float32) + msa       # residual on LN1 output
        x2 = _layer_norm(x1, g2_ref[...], be2_ref[...])
        x2_sc[...] = x2                                # f32 residual base
        x2b_sc[...] = x2.astype(jnp.bfloat16)          # cached bf16 MXU operand
        ff_sc[...] = jnp.zeros(ff_sc.shape, jnp.float32)

    h1 = jnp.dot(x2b_sc[...], w1_ref[...],
                 preferred_element_type=jnp.float32) + b1_ref[...]
    h1 = _gelu_exact(h1)                               # f32 VPU/EUP math
    ff_sc[...] += jnp.dot(h1.astype(jnp.bfloat16), w2_ref[...],
                          preferred_element_type=jnp.float32)

    @pl.when(hi == pl.num_programs(2) - 1)
    def _():
        o_ref[0] = x2_sc[...] + ff_sc[...] + b2_ref[...]   # second residual


# ------------------------------ host wrappers -------------------------------
def _pick_tile(n, preferred, multiple):
    """Largest divisor of n that is <= preferred and a multiple of `multiple`.
    Falls back to any divisor <= preferred (bounded VMEM) before using n itself,
    so awkward sizes cannot silently blow the VMEM budget."""
    if n <= preferred:
        return n
    t = (preferred // multiple) * multiple
    while t >= multiple:
        if n % t == 0:
            return t
        t -= multiple
    for t in range(preferred, 0, -1):
        if n % t == 0:
            return t
    return n


def _const2(shape):
    nd = len(shape)
    return pl.BlockSpec(shape, lambda b, s, _nd=nd: (0,) * _nd)


def _const3(shape):
    nd = len(shape)
    return pl.BlockSpec(shape, lambda b, s, h, _nd=nd: (0,) * _nd)


def prepare_layer_params(p):
    """One-time weight prep (do this at load time, not per forward): fuse QKV into
    a single (D, 3D) matrix and pre-cast all matmul weights to bf16 so no per-call
    HBM casting pass is needed."""
    return {
        "wqkv": jnp.concatenate([p["wq"], p["wk"], p["wv"]], axis=1).astype(jnp.bfloat16),
        "bqkv": jnp.concatenate([p["bq"], p["bk"], p["bv"]], axis=1).astype(jnp.float32),
        "wo": p["wo"].astype(jnp.bfloat16), "bo": p["bo"].astype(jnp.float32),
        "g1": p["g1"].astype(jnp.float32), "be1": p["be1"].astype(jnp.float32),
        "g2": p["g2"].astype(jnp.float32), "be2": p["be2"].astype(jnp.float32),
        "w1": p["w1"].astype(jnp.bfloat16), "b1": p["b1"].astype(jnp.float32),
        "w2": p["w2"].astype(jnp.bfloat16), "b2": p["b2"].astype(jnp.float32),
    }
    # TODO(synk): evaluate an fp8 weight path for wo/w1/w2 on v7x (MXU fp8) if
    # accuracy permits.


def transformer_encoder_layer(x, p, num_heads):
    """x: (B, S, D) float32. p: prepared params (see prepare_layer_params)."""
    B, S, D = x.shape
    assert p["wqkv"].shape == (D, 3 * D)
    Hm = p["w1"].shape[1]
    assert D % num_heads == 0
    dh = D // num_heads
    scale = float(dh) ** -0.5

    vmem_limit, big_vmem = _tpu_budgets()

    # Sequence tiles are multiples of 16 (bf16 (16,128) packing).  KV tiles stay at
    # 128-256; Q and MLP sequence tiles are raised on 128 MiB parts (v5e/v6e) so
    # K/V and w1/w2 re-streaming is above the HBM roofline, and kept at <=512 on
    # 64 MiB v7x.  On v7x keep B * S/TQ >= 2 so both TensorCores stay busy.
    TS_A = _pick_tile(S, 512, 16)
    TQ = _pick_tile(S, 1024 if big_vmem else 512, 16)
    TK = _pick_tile(S, 256, 16)
    TS_C = _pick_tile(S, 1024 if big_vmem else 512, 16)
    TH = _pick_tile(Hm, 512, 128)

    f32 = jnp.float32
    cparams2 = pltpu.CompilerParams(
        dimension_semantics=("parallel", "parallel"),
        vmem_limit_bytes=vmem_limit)
    cparams3 = pltpu.CompilerParams(
        dimension_semantics=("parallel", "parallel", "arbitrary"),
        vmem_limit_bytes=vmem_limit)

    # ---- (A) LayerNorm1 + fused QKV projection ------------------------------
    # TODO(synk): mark the grid-invariant weight/bias blocks single-buffered via
    # pipeline_mode=pl.Buffered(1) once verified on the target jax version; bf16
    # storage already halves their VMEM footprint.
    xn, q, k, v = pl.pallas_call(
        functools.partial(_ln_qkv_kernel, scale=scale, num_heads=num_heads,
                          dh=dh, d_model=D),
        out_shape=(
            jax.ShapeDtypeStruct((B, S, D), jnp.bfloat16),             # xn
            jax.ShapeDtypeStruct((B, num_heads, S, dh), jnp.bfloat16),  # q (scaled)
            jax.ShapeDtypeStruct((B, num_heads, S, dh), jnp.bfloat16),  # k
            jax.ShapeDtypeStruct((B, num_heads, S, dh), jnp.bfloat16),  # v
        ),
        grid_spec=pltpu.PrefetchScalarGridSpec(
            num_scalar_prefetch=0,
            grid=(B, S // TS_A),
            in_specs=[
                pl.BlockSpec((1, TS_A, D), lambda b, s: (b, s, 0)),    # x
                _const2((1, D)), _const2((1, D)),                      # g1, be1
                _const2((D, 3 * D)), _const2((1, 3 * D)),              # wqkv, bqkv
            ],
            out_specs=[
                pl.BlockSpec((1, TS_A, D), lambda b, s: (b, s, 0)),
                pl.BlockSpec((1, num_heads, TS_A, dh), lambda b, s: (b, 0, s, 0)),
                pl.BlockSpec((1, num_heads, TS_A, dh), lambda b, s: (b, 0, s, 0)),
                pl.BlockSpec((1, num_heads, TS_A, dh), lambda b, s: (b, 0, s, 0)),
            ],
        ),
        compiler_params=cparams2,
    )(x, p["g1"], p["be1"], p["wqkv"], p["bqkv"])

    # ---- (B) Flash multi-head attention (heads batched, TQ != TK) -----------
    attn = pl.pallas_call(
        functools.partial(_flash_attn_kernel, num_heads=num_heads, dh=dh),
        out_shape=jax.ShapeDtypeStruct((B, S, D), jnp.bfloat16),
        grid_spec=pltpu.PrefetchScalarGridSpec(
            num_scalar_prefetch=0,
            grid=(B, S // TQ, S // TK),
            in_specs=[
                pl.BlockSpec((1, num_heads, TQ, dh), lambda b, qi, ki: (b, 0, qi, 0)),
                pl.BlockSpec((1, num_heads, TK, dh), lambda b, qi, ki: (b, 0, ki, 0)),
                pl.BlockSpec((1, num_heads, TK, dh), lambda b, qi, ki: (b, 0, ki, 0)),
            ],
            out_specs=pl.BlockSpec((1, TQ, D), lambda b, qi, ki: (b, qi, 0)),
            scratch_shapes=[
                pltpu.VMEM((num_heads, TQ, 1), f32),    # running max
                pltpu.VMEM((num_heads, TQ, 1), f32),    # running denominator
                pltpu.VMEM((num_heads, TQ, dh), f32),   # running numerator
            ],
        ),
        compiler_params=cparams3,
    )(q, k, v)

    # ---- (C) Out-projection + residual + LN2 + GELU MLP + residual ----------
    out = pl.pallas_call(
        _out_mlp_kernel,
        out_shape=jax.ShapeDtypeStruct((B, S, D), f32),
        grid_spec=pltpu.PrefetchScalarGridSpec(
            num_scalar_prefetch=0,
            grid=(B, S // TS_C, Hm // TH),
            in_specs=[
                pl.BlockSpec((1, TS_C, D), lambda b, s, h: (b, s, 0)),  # attn (bf16)
                pl.BlockSpec((1, TS_C, D), lambda b, s, h: (b, s, 0)),  # xn (bf16)
                _const3((D, D)), _const3((1, D)),                       # wo, bo
                _const3((1, D)), _const3((1, D)),                       # g2, be2
                pl.BlockSpec((D, TH), lambda b, s, h: (0, h)),          # w1 tile
                pl.BlockSpec((1, TH), lambda b, s, h: (0, h)),          # b1 tile
                pl.BlockSpec((TH, D), lambda b, s, h: (h, 0)),          # w2 tile
                _const3((1, D)),                                        # b2
            ],
            out_specs=pl.BlockSpec((1, TS_C, D), lambda b, s, h: (b, s, 0)),
            scratch_shapes=[
                pltpu.VMEM((TS_C, D), f32),            # LN2 output (f32 residual)
                pltpu.VMEM((TS_C, D), jnp.bfloat16),   # LN2 output, bf16 MXU operand
                pltpu.VMEM((TS_C, D), f32),            # MLP accumulator
            ],
        ),
        compiler_params=cparams3,
    )(attn, xn, p["wo"], p["bo"], p["g2"], p["be2"],
      p["w1"], p["b1"], p["w2"], p["b2"])

    return out


def transformer_encoder(x, prepared_layer_params, num_heads):
    # TODO(synk): cross-call prefetch of the next layer's weights (DMA futures) not
    # implemented; layers run as sequential pallas_calls.
    for p in prepared_layer_params:
        x = transformer_encoder_layer(x, p, num_heads)
    return x


# ---------------- pure-JAX f32 reference (module semantics) -----------------
def _ref_layer(x, p, num_heads):
    mu = jnp.mean(x, axis=-1, keepdims=True)
    var = jnp.mean((x - mu) ** 2, axis=-1, keepdims=True)
    xn = (x - mu) / jnp.sqrt(var + _EPS) * p["g1"] + p["be1"]
    q = xn @ p["wq"] + p["bq"]
    k = xn @ p["wk"] + p["bk"]
    v = xn @ p["wv"] + p["bv"]
    B, S, D = x.shape
    dh = D // num_heads

    def split(t):
        return t.reshape(B, S, num_heads, dh).transpose(0, 2, 1, 3)

    qh, kh, vh = split(q), split(k), split(v)
    s = (dh ** -0.5) * jnp.einsum("bhqd,bhkd->bhqk", qh, kh)
    att = jax.nn.softmax(s, axis=-1)
    o = jnp.einsum("bhqk,bhkd->bhqd", att, vh).transpose(0, 2, 1, 3).reshape(B, S, D)
    msa = o @ p["wo"] + p["bo"]
    x1 = xn + msa
    mu2 = jnp.mean(x1, axis=-1, keepdims=True)
    var2 = jnp.mean((x1 - mu2) ** 2, axis=-1, keepdims=True)
    x2 = (x1 - mu2) / jnp.sqrt(var2 + _EPS) * p["g2"] + p["be2"]
    ff = _gelu_exact(x2 @ p["w1"] + p["b1"]) @ p["w2"] + p["b2"]
    return x2 + ff


def _make_layer_params(key, d_model, h_dim_mlp):
    ks = jax.random.split(key, 6)
    s = 0.02
    return {
        "wq": s * jax.random.normal(ks[0], (d_model, d_model), jnp.float32),
        "bq": jnp.zeros((1, d_model), jnp.float32),
        "wk": s * jax.random.normal(ks[1], (d_model, d_model), jnp.float32),
        "bk": jnp.zeros((1, d_model), jnp.float32),
        "wv": s * jax.random.normal(ks[2], (d_model, d_model), jnp.float32),
        "bv": jnp.zeros((1, d_model), jnp.float32),
        "wo": s * jax.random.normal(ks[3], (d_model, d_model), jnp.float32),
        "bo": jnp.zeros((1, d_model), jnp.float32),
        "g1": jnp.ones((1, d_model), jnp.float32),
        "be1": jnp.zeros((1, d_model), jnp.float32),
        "w1": s * jax.random.normal(ks[4], (d_model, h_dim_mlp), jnp.float32),
        "b1": jnp.zeros((1, h_dim_mlp), jnp.float32),
        "w2": s * jax.random.normal(ks[5], (h_dim_mlp, d_model), jnp.float32),
        "b2": jnp.zeros((1, d_model), jnp.float32),
        "g2": jnp.ones((1, d_model), jnp.float32),
        "be2": jnp.zeros((1, d_model), jnp.float32),
    }


if __name__ == "__main__":
    # NOTE: demo shapes are small; in production keep d_model/num_heads (= dh) a
    # multiple of 128 for lane-dense head slices and full-width MXU contractions.
    B, S, d_model = 2, 16, 64
    num_heads, h_dim_mlp, num_layers = 4, 128, 2

    key = jax.random.PRNGKey(0)
    key, xk = jax.random.split(key)
    x = jax.random.normal(xk, (B, S, d_model), jnp.float32)

    layer_keys = jax.random.split(key, num_layers)
    layer_params = [_make_layer_params(k, d_model, h_dim_mlp) for k in layer_keys]
    # One-time weight prep (fused bf16 QKV etc.) hoisted out of the forward pass.
    prepared = [prepare_layer_params(p) for p in layer_params]

    out = transformer_encoder(x, prepared, num_heads)
    out = jax.block_until_ready(out)

    # sanity check against the f32 pure-JAX reference (kernel uses bf16 MXU inputs
    # and bf16-stored residuals, hence the loose tolerance)
    ref = x
    for p in layer_params:
        ref = _ref_layer(ref, p, num_heads)
    assert out.shape == (B, S, d_model)
    max_err = float(jnp.max(jnp.abs(out - ref)))
    assert jnp.allclose(out, ref, atol=2e-2, rtol=2e-2), (
        "mismatch vs reference, max abs err = %e" % max_err)

    print("KERNEL_OK")
</pallas_src>

<mosaic_0001>
module attributes {stable_mosaic.version = 11 : i64} {
  func.func @_ln_qkv_kernel(%arg0: i32, %arg1: i32, %arg2: memref<1x16x64xf32, #tpu.memory_space<vmem>>, %arg3: memref<1x64xf32, #tpu.memory_space<vmem>>, %arg4: memref<1x64xf32, #tpu.memory_space<vmem>>, %arg5: memref<64x192xbf16, #tpu.memory_space<vmem>>, %arg6: memref<1x192xf32, #tpu.memory_space<vmem>>, %arg7: memref<1x16x64xbf16, #tpu.memory_space<vmem>>, %arg8: memref<1x4x16x16xbf16, #tpu.memory_space<vmem>>, %arg9: memref<1x4x16x16xbf16, #tpu.memory_space<vmem>>, %arg10: memref<1x4x16x16xbf16, #tpu.memory_space<vmem>>) attributes {dimension_semantics = [#tpu.dimension_semantics<parallel>, #tpu.dimension_semantics<parallel>], iteration_bounds = array<i64: 2, 1>, scalar_prefetch = 0 : i64, scratch_operands = 0 : i64, tpu.core_type = #tpu.core_type<tc>, window_params = [{transform_indices = @transform_0, window_bounds = array<i64: 1, 16, 64>}, {pipeline_mode = #tpu.pipeline_mode<synchronous>, transform_indices = @transform_1, window_bounds = array<i64: 1, 64>}, {pipeline_mode = #tpu.pipeline_mode<synchronous>, transform_indices = @transform_2, window_bounds = array<i64: 1, 64>}, {pipeline_mode = #tpu.pipeline_mode<synchronous>, transform_indices = @transform_3, window_bounds = array<i64: 64, 192>}, {pipeline_mode = #tpu.pipeline_mode<synchronous>, transform_indices = @transform_4, window_bounds = array<i64: 1, 192>}, {transform_indices = @transform_5, window_bounds = array<i64: 1, 16, 64>}, {transform_indices = @transform_6, window_bounds = array<i64: 1, 4, 16, 16>}, {transform_indices = @transform_7, window_bounds = array<i64: 1, 4, 16, 16>}, {transform_indices = @transform_8, window_bounds = array<i64: 1, 4, 16, 16>}]} {
    %c0 = arith.constant 0 : index
    %c0_0 = arith.constant 0 : index
    %c0_1 = arith.constant 0 : index
    %0 = vector.load %arg2[%c0, %c0_0, %c0_1] : memref<1x16x64xf32, #tpu.memory_space<vmem>>, vector<1x16x64xf32>
    %1 = vector.shape_cast %0 : vector<1x16x64xf32> to vector<16x64xf32>
    %c0_2 = arith.constant 0 : index
    %c0_3 = arith.constant 0 : index
    %2 = vector.load %arg3[%c0_2, %c0_3] : memref<1x64xf32, #tpu.memory_space<vmem>>, vector<1x64xf32>
    %c0_4 = arith.constant 0 : index
    %c0_5 = arith.constant 0 : index
    %3 = vector.load %arg4[%c0_4, %c0_5] : memref<1x64xf32, #tpu.memory_space<vmem>>, vector<1x64xf32>
    %cst = arith.constant dense<0.000000e+00> : vector<16xf32>
    %4 = vector.multi_reduction <add>, %1, %cst [1] : vector<16x64xf32> to vector<16xf32>
    %5 = vector.shape_cast %4 : vector<16xf32> to vector<16x1xf32>
    %cst_6 = arith.constant 6.400000e+01 : f32
    %6 = vector.broadcast %cst_6 : f32 to vector<16x1xf32>
    %7 = arith.divf %5, %6 : vector<16x1xf32>
    %8 = vector.broadcast %7 : vector<16x1xf32> to vector<16x64xf32>
    %9 = arith.subf %1, %8 : vector<16x64xf32>
    %10 = arith.mulf %9, %9 : vector<16x64xf32>
    %cst_7 = arith.constant dense<0.000000e+00> : vector<16xf32>
    %11 = vector.multi_reduction <add>, %10, %cst_7 [1] : vector<16x64xf32> to vector<16xf32>
    %12 = vector.shape_cast %11 : vector<16xf32> to vector<16x1xf32>
    %cst_8 = arith.constant 6.400000e+01 : f32
    %13 = vector.broadcast %cst_8 : f32 to vector<16x1xf32>
    %14 = arith.divf %12, %13 : vector<16x1xf32>
    %15 = vector.broadcast %7 : vector<16x1xf32> to vector<16x64xf32>
    %16 = arith.subf %1, %15 : vector<16x64xf32>
    %cst_9 = arith.constant 9.99999974E-6 : f32
    %17 = vector.broadcast %cst_9 : f32 to vector<16x1xf32>
    %18 = arith.addf %14, %17 : vector<16x1xf32>
    %19 = math.rsqrt %18 : vector<16x1xf32>
    %20 = vector.broadcast %19 : vector<16x1xf32> to vector<16x64xf32>
    %21 = arith.mulf %16, %20 : vector<16x64xf32>
    %22 = vector.broadcast %2 : vector<1x64xf32> to vector<16x64xf32>
    %23 = arith.mulf %21, %22 : vector<16x64xf32>
    %24 = vector.broadcast %3 : vector<1x64xf32> to vector<16x64xf32>
    %25 = arith.addf %23, %24 : vector<16x64xf32>
    %26 = arith.truncf %25 : vector<16x64xf32> to vector<16x64xbf16>
    %c0_10 = arith.constant 0 : index
    %c0_11 = arith.constant 0 : index
    %c0_12 = arith.constant 0 : index
    %27 = vector.load %arg7[%c0_10, %c0_11, %c0_12] : memref<1x16x64xbf16, #tpu.memory_space<vmem>>, vector<1x16x64xbf16>
    %28 = vector.shape_cast %27 : vector<1x16x64xbf16> to vector<16x64xbf16>
    %29 = vector.shape_cast %26 : vector<16x64xbf16> to vector<1x16x64xbf16>
    tpu.vector_store %arg7[%c0_10, %c0_11, %c0_12], %29 {strides = array<i32>} : memref<1x16x64xbf16, #tpu.memory_space<vmem>>, vector<1x16x64xbf16>,
    %30 = arith.truncf %25 : vector<16x64xf32> to vector<16x64xbf16>
    %c0_13 = arith.constant 0 : index
    %c0_14 = arith.constant 0 : index
    %31 = vector.load %arg5[%c0_13, %c0_14] : memref<64x192xbf16, #tpu.memory_space<vmem>>, vector<64x192xbf16>
    %cst_15 = arith.constant dense<0.000000e+00> : vector<16x192xf32>
    %32 = tpu.matmul %30, %31, %cst_15 {dimension_numbers = #tpu.dot_dimension_numbers<[1], [0], [0], [1], [0, 0, 1, 1], [], []>} : vector<16x64xbf16>, vector<64x192xbf16>, vector<16x192xf32> -> vector<16x192xf32>
    %c0_16 = arith.constant 0 : index
    %c0_17 = arith.constant 0 : index
    %33 = vector.load %arg6[%c0_16, %c0_17] : memref<1x192xf32, #tpu.memory_space<vmem>>, vector<1x192xf32>
    %34 = vector.broadcast %33 : vector<1x192xf32> to vector<16x192xf32>
    %35 = arith.addf %32, %34 : vector<16x192xf32>
    %36 = vector.extract_strided_slice %35 {offsets = [0, 0], sizes = [16, 16], strides = [1, 1]} : vector<16x192xf32> to vector<16x16xf32>
    %cst_18 = arith.constant 2.500000e-01 : f32
    %37 = vector.broadcast %cst_18 : f32 to vector<16x16xf32>
    %38 = arith.mulf %36, %37 : vector<16x16xf32>
    %39 = arith.truncf %38 : vector<16x16xf32> to vector<16x16xbf16>
    %c0_19 = arith.constant 0 : index
    %c0_20 = arith.constant 0 : index
    %c0_21 = arith.constant 0 : index
    %c0_22 = arith.constant 0 : index
    %40 = vector.load %arg8[%c0_19, %c0_20, %c0_21, %c0_22] : memref<1x4x16x16xbf16, #tpu.memory_space<vmem>>, vector<1x1x16x16xbf16>
    %41 = vector.shape_cast %40 : vector<1x1x16x16xbf16> to vector<16x16xbf16>
    %42 = vector.shape_cast %39 : vector<16x16xbf16> to vector<1x1x16x16xbf16>
    tpu.vector_store %arg8[%c0_19, %c0_20, %c0_21, %c0_22], %42 {strides = array<i32>} : memref<1x4x16x16xbf16, #tpu.memory_space<vmem>>, vector<1x1x16x16xbf16>,
    %43 = vector.extract_strided_slice %35 {offsets = [0, 64], sizes = [16, 16], strides = [1, 1]} : vector<16x192xf32> to vector<16x16xf32>
    %44 = arith.truncf %43 : vector<16x16xf32> to vector<16x16xbf16>
    %c0_23 = arith.constant 0 : index
    %c0_24 = arith.constant 0 : index
    %c0_25 = arith.constant 0 : index
    %c0_26 = arith.constant 0 : index
    %45 = vector.load %arg9[%c0_23, %c0_24, %c0_25, %c0_26] : memref<1x4x16x16xbf16, #tpu.memory_space<vmem>>, vector<1x1x16x16xbf16>
    %46 = vector.shape_cast %45 : vector<1x1x16x16xbf16> to vector<16x16xbf16>
    %47 = vector.shape_cast %44 : vector<16x16xbf16> to vector<1x1x16x16xbf16>
    tpu.vector_store %arg9[%c0_23, %c0_24, %c0_25, %c0_26], %47 {strides = array<i32>} : memref<1x4x16x16xbf16, #tpu.memory_space<vmem>>, vector<1x1x16x16xbf16>,
    %48 = vector.extract_strided_slice %35 {offsets = [0, 128], sizes = [16, 16], strides = [1, 1]} : vector<16x192xf32> to vector<16x16xf32>
    %49 = arith.truncf %48 : vector<16x16xf32> to vector<16x16xbf16>
    %c0_27 = arith.constant 0 : index
    %c0_28 = arith.constant 0 : index
    %c0_29 = arith.constant 0 : index
    %c0_30 = arith.constant 0 : index
    %50 = vector.load %arg10[%c0_27, %c0_28, %c0_29, %c0_30] : memref<1x4x16x16xbf16, #tpu.memory_space<vmem>>, vector<1x1x16x16xbf16>
    %51 = vector.shape_cast %50 : vector<1x1x16x16xbf16> to vector<16x16xbf16>
    %52 = vector.shape_cast %49 : vector<16x16xbf16> to vector<1x1x16x16xbf16>
    tpu.vector_store %arg10[%c0_27, %c0_28, %c0_29, %c0_30], %52 {strides = array<i32>} : memref<1x4x16x16xbf16, #tpu.memory_space<vmem>>, vector<1x1x16x16xbf16>,
    %53 = vector.extract_strided_slice %35 {offsets = [0, 16], sizes = [16, 16], strides = [1, 1]} : vector<16x192xf32> to vector<16x16xf32>
    %cst_31 = arith.constant 2.500000e-01 : f32
    %54 = vector.broadcast %cst_31 : f32 to vector<16x16xf32>
    %55 = arith.mulf %53, %54 : vector<16x16xf32>
    %56 = arith.truncf %55 : vector<16x16xf32> to vector<16x16xbf16>
    %c0_32 = arith.constant 0 : index
    %c1 = arith.constant 1 : index
    %c0_33 = arith.constant 0 : index
    %c0_34 = arith.constant 0 : index
    %57 = vector.load %arg8[%c0_32, %c1, %c0_33, %c0_34] : memref<1x4x16x16xbf16, #tpu.memory_space<vmem>>, vector<1x1x16x16xbf16>
    %58 = vector.shape_cast %57 : vector<1x1x16x16xbf16> to vector<16x16xbf16>
    %59 = vector.shape_cast %56 : vector<16x16xbf16> to vector<1x1x16x16xbf16>
    tpu.vector_store %arg8[%c0_32, %c1, %c0_33, %c0_34], %59 {strides = array<i32>} : memref<1x4x16x16xbf16, #tpu.memory_space<vmem>>, vector<1x1x16x16xbf16>,
    %60 = vector.extract_strided_slice %35 {offsets = [0, 80], sizes = [16, 16], strides = [1, 1]} : vector<16x192xf32> to vector<16x16xf32>
    %61 = arith.truncf %60 : vector<16x16xf32> to vector<16x16xbf16>
    %c0_35 = arith.constant 0 : index
    %c1_36 = arith.constant 1 : index
    %c0_37 = arith.constant 0 : index
    %c0_38 = arith.constant 0 : index
    %62 = vector.load %arg9[%c0_35, %c1_36, %c0_37, %c0_38] : memref<1x4x16x16xbf16, #tpu.memory_space<vmem>>, vector<1x1x16x16xbf16>
    %63 = vector.shape_cast %62 : vector<1x1x16x16xbf16> to vector<16x16xbf16>
    %64 = vector.shape_cast %61 : vector<16x16xbf16> to vector<1x1x16x16xbf16>
    tpu.vector_store %arg9[%c0_35, %c1_36, %c0_37, %c0_38], %64 {strides = array<i32>} : memref<1x4x16x16xbf16, #tpu.memory_space<vmem>>, vector<1x1x16x16xbf16>,
    %65 = vector.extract_strided_slice %35 {offsets = [0, 144], sizes = [16, 16], strides = [1, 1]} : vector<16x192xf32> to vector<16x16xf32>
    %66 = arith.truncf %65 : vector<16x16xf32> to vector<16x16xbf16>
    %c0_39 = arith.constant 0 : index
    %c1_40 = arith.constant 1 : index
    %c0_41 = arith.constant 0 : index
    %c0_42 = arith.constant 0 : index
    %67 = vector.load %arg10[%c0_39, %c1_40, %c0_41, %c0_42] : memref<1x4x16x16xbf16, #tpu.memory_space<vmem>>, vector<1x1x16x16xbf16>
    %68 = vector.shape_cast %67 : vector<1x1x16x16xbf16> to vector<16x16xbf16>
    %69 = vector.shape_cast %66 : vector<16x16xbf16> to vector<1x1x16x16xbf16>
    tpu.vector_store %arg10[%c0_39, %c1_40, %c0_41, %c0_42], %69 {strides = array<i32>} : memref<1x4x16x16xbf16, #tpu.memory_space<vmem>>, vector<1x1x16x16xbf16>,
    %70 = vector.extract_strided_slice %35 {offsets = [0, 32], sizes = [16, 16], strides = [1, 1]} : vector<16x192xf32> to vector<16x16xf32>
    %cst_43 = arith.constant 2.500000e-01 : f32
    %71 = vector.broadcast %cst_43 : f32 to vector<16x16xf32>
    %72 = arith.mulf %70, %71 : vector<16x16xf32>
    %73 = arith.truncf %72 : vector<16x16xf32> to vector<16x16xbf16>
    %c0_44 = arith.constant 0 : index
    %c2 = arith.constant 2 : index
    %c0_45 = arith.constant 0 : index
    %c0_46 = arith.constant 0 : index
    %74 = vector.load %arg8[%c0_44, %c2, %c0_45, %c0_46] : memref<1x4x16x16xbf16, #tpu.memory_space<vmem>>, vector<1x1x16x16xbf16>
    %75 = vector.shape_cast %74 : vector<1x1x16x16xbf16> to vector<16x16xbf16>
    %76 = vector.shape_cast %73 : vector<16x16xbf16> to vector<1x1x16x16xbf16>
    tpu.vector_store %arg8[%c0_44, %c2, %c0_45, %c0_46], %76 {strides = array<i32>} : memref<1x4x16x16xbf16, #tpu.memory_space<vmem>>, vector<1x1x16x16xbf16>,
    %77 = vector.extract_strided_slice %35 {offsets = [0, 96], sizes = [16, 16], strides = [1, 1]} : vector<16x192xf32> to vector<16x16xf32>
    %78 = arith.truncf %77 : vector<16x16xf32> to vector<16x16xbf16>
    %c0_47 = arith.constant 0 : index
    %c2_48 = arith.constant 2 : index
    %c0_49 = arith.constant 0 : index
    %c0_50 = arith.constant 0 : index
    %79 = vector.load %arg9[%c0_47, %c2_48, %c0_49, %c0_50] : memref<1x4x16x16xbf16, #tpu.memory_space<vmem>>, vector<1x1x16x16xbf16>
    %80 = vector.shape_cast %79 : vector<1x1x16x16xbf16> to vector<16x16xbf16>
    %81 = vector.shape_cast %78 : vector<16x16xbf16> to vector<1x1x16x16xbf16>
    tpu.vector_store %arg9[%c0_47, %c2_48, %c0_49, %c0_50], %81 {strides = array<i32>} : memref<1x4x16x16xbf16, #tpu.memory_space<vmem>>, vector<1x1x16x16xbf16>,
    %82 = vector.extract_strided_slice %35 {offsets = [0, 160], sizes = [16, 16], strides = [1, 1]} : vector<16x192xf32> to vector<16x16xf32>
    %83 = arith.truncf %82 : vector<16x16xf32> to vector<16x16xbf16>
    %c0_51 = arith.constant 0 : index
    %c2_52 = arith.constant 2 : index
    %c0_53 = arith.constant 0 : index
    %c0_54 = arith.constant 0 : index
    %84 = vector.load %arg10[%c0_51, %c2_52, %c0_53, %c0_54] : memref<1x4x16x16xbf16, #tpu.memory_space<vmem>>, vector<1x1x16x16xbf16>
    %85 = vector.shape_cast %84 : vector<1x1x16x16xbf16> to vector<16x16xbf16>
    %86 = vector.shape_cast %83 : vector<16x16xbf16> to vector<1x1x16x16xbf16>
    tpu.vector_store %arg10[%c0_51, %c2_52, %c0_53, %c0_54], %86 {strides = array<i32>} : memref<1x4x16x16xbf16, #tpu.memory_space<vmem>>, vector<1x1x16x16xbf16>,
    %87 = vector.extract_strided_slice %35 {offsets = [0, 48], sizes = [16, 16], strides = [1, 1]} : vector<16x192xf32> to vector<16x16xf32>
    %cst_55 = arith.constant 2.500000e-01 : f32
    %88 = vector.broadcast %cst_55 : f32 to vector<16x16xf32>
    %89 = arith.mulf %87, %88 : vector<16x16xf32>
    %90 = arith.truncf %89 : vector<16x16xf32> to vector<16x16xbf16>
    %c0_56 = arith.constant 0 : index
    %c3 = arith.constant 3 : index
    %c0_57 = arith.constant 0 : index
    %c0_58 = arith.constant 0 : index
    %91 = vector.load %arg8[%c0_56, %c3, %c0_57, %c0_58] : memref<1x4x16x16xbf16, #tpu.memory_space<vmem>>, vector<1x1x16x16xbf16>
    %92 = vector.shape_cast %91 : vector<1x1x16x16xbf16> to vector<16x16xbf16>
    %93 = vector.shape_cast %90 : vector<16x16xbf16> to vector<1x1x16x16xbf16>
    tpu.vector_store %arg8[%c0_56, %c3, %c0_57, %c0_58], %93 {strides = array<i32>} : memref<1x4x16x16xbf16, #tpu.memory_space<vmem>>, vector<1x1x16x16xbf16>,
    %94 = vector.extract_strided_slice %35 {offsets = [0, 112], sizes = [16, 16], strides = [1, 1]} : vector<16x192xf32> to vector<16x16xf32>
    %95 = arith.truncf %94 : vector<16x16xf32> to vector<16x16xbf16>
    %c0_59 = arith.constant 0 : index
    %c3_60 = arith.constant 3 : index
    %c0_61 = arith.constant 0 : index
    %c0_62 = arith.constant 0 : index
    %96 = vector.load %arg9[%c0_59, %c3_60, %c0_61, %c0_62] : memref<1x4x16x16xbf16, #tpu.memory_space<vmem>>, vector<1x1x16x16xbf16>
    %97 = vector.shape_cast %96 : vector<1x1x16x16xbf16> to vector<16x16xbf16>
    %98 = vector.shape_cast %95 : vector<16x16xbf16> to vector<1x1x16x16xbf16>
    tpu.vector_store %arg9[%c0_59, %c3_60, %c0_61, %c0_62], %98 {strides = array<i32>} : memref<1x4x16x16xbf16, #tpu.memory_space<vmem>>, vector<1x1x16x16xbf16>,
    %99 = vector.extract_strided_slice %35 {offsets = [0, 176], sizes = [16, 16], strides = [1, 1]} : vector<16x192xf32> to vector<16x16xf32>
    %100 = arith.truncf %99 : vector<16x16xf32> to vector<16x16xbf16>
    %c0_63 = arith.constant 0 : index
    %c3_64 = arith.constant 3 : index
    %c0_65 = arith.constant 0 : index
    %c0_66 = arith.constant 0 : index
    %101 = vector.load %arg10[%c0_63, %c3_64, %c0_65, %c0_66] : memref<1x4x16x16xbf16, #tpu.memory_space<vmem>>, vector<1x1x16x16xbf16>
    %102 = vector.shape_cast %101 : vector<1x1x16x16xbf16> to vector<16x16xbf16>
    %103 = vector.shape_cast %100 : vector<16x16xbf16> to vector<1x1x16x16xbf16>
    tpu.vector_store %arg10[%c0_63, %c3_64, %c0_65, %c0_66], %103 {strides = array<i32>} : memref<1x4x16x16xbf16, #tpu.memory_space<vmem>>, vector<1x1x16x16xbf16>,
    return
  }
  func.func @transform_0(%arg0: i32, %arg1: i32) -> (i32, i32, i32) {
    %c0_i32 = arith.constant 0 : i32
    %c0_i32_0 = arith.constant 0 : i32
    return %arg0, %arg1, %c0_i32 : i32, i32, i32
  }
  func.func @transform_1(%arg0: i32, %arg1: i32) -> (i32, i32) {
    %c0_i32 = arith.constant 0 : i32
    %c0_i32_0 = arith.constant 0 : i32
    %c0_i32_1 = arith.constant 0 : i32
    return %c0_i32, %c0_i32_0 : i32, i32
  }
  func.func @transform_2(%arg0: i32, %arg1: i32) -> (i32, i32) {
    %c0_i32 = arith.constant 0 : i32
    %c0_i32_0 = arith.constant 0 : i32
    %c0_i32_1 = arith.constant 0 : i32
    return %c0_i32, %c0_i32_0 : i32, i32
  }
  func.func @transform_3(%arg0: i32, %arg1: i32) -> (i32, i32) {
    %c0_i32 = arith.constant 0 : i32
    %c0_i32_0 = arith.constant 0 : i32
    %c0_i32_1 = arith.constant 0 : i32
    return %c0_i32, %c0_i32_0 : i32, i32
  }
  func.func @transform_4(%arg0: i32, %arg1: i32) -> (i32, i32) {
    %c0_i32 = arith.constant 0 : i32
    %c0_i32_0 = arith.constant 0 : i32
    %c0_i32_1 = arith.constant 0 : i32
    return %c0_i32, %c0_i32_0 : i32, i32
  }
  func.func @transform_5(%arg0: i32, %arg1: i32) -> (i32, i32, i32) {
    %c0_i32 = arith.constant 0 : i32
    %c0_i32_0 = arith.constant 0 : i32
    return %arg0, %arg1, %c0_i32 : i32, i32, i32
  }
  func.func @transform_6(%arg0: i32, %arg1: i32) -> (i32, i32, i32, i32) {
    %c0_i32 = arith.constant 0 : i32
    %c0_i32_0 = arith.constant 0 : i32
    %c0_i32_1 = arith.constant 0 : i32
    return %arg0, %c0_i32, %arg1, %c0_i32_0 : i32, i32, i32, i32
  }
  func.func @transform_7(%arg0: i32, %arg1: i32) -> (i32, i32, i32, i32) {
    %c0_i32 = arith.constant 0 : i32
    %c0_i32_0 = arith.constant 0 : i32
    %c0_i32_1 = arith.constant 0 : i32
    return %arg0, %c0_i32, %arg1, %c0_i32_0 : i32, i32, i32, i32
  }
  func.func @transform_8(%arg0: i32, %arg1: i32) -> (i32, i32, i32, i32) {
    %c0_i32 = arith.constant 0 : i32
    %c0_i32_0 = arith.constant 0 : i32
    %c0_i32_1 = arith.constant 0 : i32
    return %arg0, %c0_i32, %arg1, %c0_i32_0 : i32, i32, i32, i32
  }
}

</mosaic_0001>

<llo_original>
// kernel: tpu_custom_call.1
$region0: #{tpu_custom_call.1}
  #allocation0 [shape = 'u32[]', space=smem, size = 0x4, offset = 0x4, fixed_abs, tag = 'smem constant byte address 0x4 - core index']
  #allocation1 [shape = 'u32[144,128]{1,0:T(1,128)}', space=vmem, size = 0x12000, scoped, tag = 'internal scratch']
  %s0 = inlined_call_operand.hbm [shape: f32[2,16,64], index: 0, kind: input, shape index: {}]
  %s1 = inlined_call_operand.vmem [shape: f32[1,64], index: 1, kind: input, shape index: {}]
  %s2 = inlined_call_operand.hbm [shape: f32[1,64], index: 2, kind: input, shape index: {}]
  %s3 = inlined_call_operand.hbm [shape: bf16[64,192], index: 3, kind: input, shape index: {}]
  %s4 = inlined_call_operand.vmem [shape: f32[1,192], index: 4, kind: input, shape index: {}]
  %s5 = inlined_call_operand.hbm [shape: bf16[2,16,64], index: 5, kind: output, shape index: {0}]
  %s6 = inlined_call_operand.hbm [shape: bf16[2,4,16,16], index: 6, kind: output, shape index: {1}]
  %s7 = inlined_call_operand.hbm [shape: bf16[2,4,16,16], index: 7, kind: output, shape index: {2}]
  %s8 = inlined_call_operand.hbm [shape: bf16[2,4,16,16], index: 8, kind: output, shape index: {3}]
  %9 = xla_tuple %s5, %s6, %s7, %s8
  %s10 = sld [smem:[#allocation0]]
  $region89: #{tpu_custom_call.1} parent=0
    _
  %s12 = ssub.s32 1, %s10
  %s13 = scalar_select 0, %s12, %s10
  $region1: #{tpu_custom_call.1} parent=0
    #allocation2 [shape = 'u8[16384]{0}', space=vmem, size = 0x4000, scoped, tag = 'input window, operand 0']
    #allocation3 [shape = 's32[2]{0}', space=sflag, size = 0x8, scoped, tag = 'scoped memory for tpu_custom_call.1']
    #allocation4 [shape = 's32[2]{0}', space=sflag, size = 0x8, scoped, tag = 'scoped memory for tpu_custom_call.1']
    #allocation5 [shape = 'u8[512]{0}', space=vmem, size = 0x400, scoped, tag = 'input window, operand 2, single buffered']
    #allocation6 [shape = 's32[1]{0}', space=sflag, size = 0x4, scoped, tag = 'scoped memory for tpu_custom_call.1']
    #allocation7 [shape = 'u8[32768]{0}', space=vmem, size = 0x8000, scoped, tag = 'input window, operand 3, single buffered']
    #allocation8 [shape = 'u8[8192]{0}', space=vmem, size = 0x2000, scoped, tag = 'output window, operand 0']
    #allocation9 [shape = 'u8[32768]{0}', space=vmem, size = 0x8000, scoped, tag = 'output window, operand 1']
    #allocation10 [shape = 's32[2]{0}', space=sflag, size = 0x8, scoped, tag = 'scoped memory for tpu_custom_call.1']
    #allocation11 [shape = 'u8[32768]{0}', space=vmem, size = 0x8000, scoped, tag = 'output window, operand 2']
    #allocation12 [shape = 'u8[32768]{0}', space=vmem, size = 0x8000, scoped, tag = 'output window, operand 3']
    #allocation13 [shape = 's32[2]{0}', space=sflag, size = 0x8, scoped, tag = 'scoped memory for tpu_custom_call.1']
    %14 = vsyncpa [#allocation3], 0
    %s15 = scalar_lea.sflag [#allocation3], 1
    %16 = vsyncpa %s15, 0
    %17 = vsyncpa [#allocation6], 0
    %18 = vsyncpa [#allocation4], 0
    %s19 = scalar_lea.sflag [#allocation4], 1
    %20 = vsyncpa %s19, 0
    %21 = vsyncpa [#allocation10], 0
    %s22 = scalar_lea.sflag [#allocation10], 1
    %23 = vsyncpa %s22, 0
    %24 = vsyncpa [#allocation13], 0
    %s25 = scalar_lea.sflag [#allocation13], 1
    %26 = vsyncpa %s25, 0
    loop: start=0, step=1, limit=4
    $region2: #{tpu_custom_call.1} parent=1 // loop_pre_header
      _
    $region3: #{tpu_custom_call.1} parent=1 // loop_header
      %s28 = sphi 0, %s32
      %p29 = scmp.ge.s32.totalorder %s28, 4
      %s35 = sphi 0, %s47
      %s36 = sphi 0, %s43
      %s37 = sphi 0, %s35
      %s38 = sphi 0, %s36
      %s39 = sphi 0, %s37
      %s40 = sphi 0, %s38
      %s52 = sphi 0, %s54
      %s55 = sphi 0, %s52
      %s56 = sphi 0, %s55
      %s72 = sphi 0, %s56
      %s76 = sphi 0, %s76
      %s78 = sphi 0, %s76
      %s79 = sphi 0, %s78
      %s93 = sphi 0, %s79
      %s97 = sphi 0, %s97
      %s99 = sphi 0, %s97
      %s100 = sphi 0, %s99
      %s114 = sphi 0, %s100
      %s118 = sphi 0, %s118
      %s120 = sphi 0, %s118
      %s121 = sphi 0, %s120
      %s135 = sphi 0, %s121
      %s139 = sphi 0, %s139
      %s141 = sphi 0, %s139
      %s142 = sphi 0, %s141
      %s156 = sphi 0, %s142
      %s164 = sphi 0, %s166
      %s167 = sphi 0, %s164
      %s168 = sphi 0, %s167
      %s184 = sphi 0, %s168
      %s192 = sphi 0, %s194
      %s195 = sphi 0, %s192
      %s196 = sphi 0, %s195
      %s212 = sphi 0, %s196
      %s220 = sphi 0, %s222
      %s223 = sphi 0, %s220
      %s224 = sphi 0, %s223
      %s240 = sphi 0, %s224
      %s248 = sphi 0, %s250
      %s251 = sphi 0, %s248
      %s252 = sphi 0, %s251
      %s268 = sphi 0, %s252
    $region4: #{tpu_custom_call.1} parent=1 // loop_header_branch
      %31 = sbr.rel (%p29) target = $region8
    $region5: #{tpu_custom_call.1} parent=1 // loop_body
      %s33 = ssub.s32 %s28, 1
      %s34 = ssub.s32 %s28, 2
      %s41 = sadd.s32 1, %s36
      %p42 = scmp.ge.s32.totalorder %s41, 1
      %s43 = scalar_select %p42, 0, %s41
      %s44 = sadd.s32 1, %s35
      %s45 = scalar_select %p42, %s44, %s35
      %p46 = scmp.ge.s32.totalorder %s45, 2
      %s47 = scalar_select %p46, 0, %s45
      %s48 = ssub.s32 %s35, %s47
      %s49 = ssub.s32 %s36, %s43
      %s50 = sor.u32 %s48, %s49
      %p51 = scmp.eq.s32.totalorder %s50, 0
      %s53 = sadd.s32 %s52, 1
      %s54 = scalar_select %p51, %s52, %s53
      %p57 = pneg %p51
      %p58 = scmp.eq.s32.totalorder %s28, 1
      %p59 = por %p57, %p58
      %p60 = scmp.ne.s32.totalorder %s52, %s55
      %p61 = scmp.eq.s32.totalorder %s28, 0
      %p62 = por %p60, %p61
      %p63 = scmp.ne.s32.totalorder %s52, %s55
      %p64 = scmp.eq.s32.totalorder %s33, 1
      %p65 = por %p63, %p64
      %p66 = scmp.ne.s32.totalorder %s55, %s56
      %p67 = scmp.eq.s32.totalorder %s33, 0
      %p68 = por %p66, %p67
      %p69 = scmp.ne.s32.totalorder %s55, %s56
      %p70 = scmp.eq.s32.totalorder %s34, 1
      %p71 = por %p69, %p70
      %p73 = scmp.ne.s32.totalorder %s56, %s72
      %p74 = scmp.eq.s32.totalorder %s34, 0
      %p75 = por %p73, %p74
      %s77 = sadd.s32 %s76, 1
      %p80 = scmp.eq.s32.totalorder %s28, 1
      %p81 = scmp.ne.s32.totalorder %s76, %s78
      %p82 = scmp.eq.s32.totalorder %s28, 0
      %p83 = por %p81, %p82
      %p84 = scmp.ne.s32.totalorder %s76, %s78
      %p85 = scmp.eq.s32.totalorder %s33, 1
      %p86 = por %p84, %p85
      %p87 = scmp.ne.s32.totalorder %s78, %s79
      %p88 = scmp.eq.s32.totalorder %s33, 0
      %p89 = por %p87, %p88
      %p90 = scmp.ne.s32.totalorder %s78, %s79
      %p91 = scmp.eq.s32.totalorder %s34, 1
      %p92 = por %p90, %p91
      %p94 = scmp.ne.s32.totalorder %s79, %s93
      %p95 = scmp.eq.s32.totalorder %s34, 0
      %p96 = por %p94, %p95
      %s98 = sadd.s32 %s97, 1
      %p101 = scmp.eq.s32.totalorder %s28, 1
      %p102 = scmp.ne.s32.totalorder %s97, %s99
      %p103 = scmp.eq.s32.totalorder %s28, 0
      %p104 = por %p102, %p103
      %p105 = scmp.ne.s32.totalorder %s97, %s99
      %p106 = scmp.eq.s32.totalorder %s33, 1
      %p107 = por %p105, %p106
      %p108 = scmp.ne.s32.totalorder %s99, %s100
      %p109 = scmp.eq.s32.totalorder %s33, 0
      %p110 = por %p108, %p109
      %p111 = scmp.ne.s32.totalorder %s99, %s100
      %p112 = scmp.eq.s32.totalorder %s34, 1
      %p113 = por %p111, %p112
      %p115 = scmp.ne.s32.totalorder %s100, %s114
      %p116 = scmp.eq.s32.totalorder %s34, 0
      %p117 = por %p115, %p116
      %s119 = sadd.s32 %s118, 1
      %p122 = scmp.eq.s32.totalorder %s28, 1
      %p123 = scmp.ne.s32.totalorder %s118, %s120
      %p124 = scmp.eq.s32.totalorder %s28, 0
      %p125 = por %p123, %p124
      %p126 = scmp.ne.s32.totalorder %s118, %s120
      %p127 = scmp.eq.s32.totalorder %s33, 1
      %p128 = por %p126, %p127
      %p129 = scmp.ne.s32.totalorder %s120, %s121
      %p130 = scmp.eq.s32.totalorder %s33, 0
      %p131 = por %p129, %p130
      %p132 = scmp.ne.s32.totalorder %s120, %s121
      %p133 = scmp.eq.s32.totalorder %s34, 1
      %p134 = por %p132, %p133
      %p136 = scmp.ne.s32.totalorder %s121, %s135
      %p137 = scmp.eq.s32.totalorder %s34, 0
      %p138 = por %p136, %p137
      %s140 = sadd.s32 %s139, 1
      %p143 = scmp.eq.s32.totalorder %s28, 1
      %p144 = scmp.ne.s32.totalorder %s139, %s141
      %p145 = scmp.eq.s32.totalorder %s28, 0
      %p146 = por %p144, %p145
      %p147 = scmp.ne.s32.totalorder %s139, %s141
      %p148 = scmp.eq.s32.totalorder %s33, 1
      %p149 = por %p147, %p148
      %p150 = scmp.ne.s32.totalorder %s141, %s142
      %p151 = scmp.eq.s32.totalorder %s33, 0
      %p152 = por %p150, %p151
      %p153 = scmp.ne.s32.totalorder %s141, %s142
      %p154 = scmp.eq.s32.totalorder %s34, 1
      %p155 = por %p153, %p154
      %p157 = scmp.ne.s32.totalorder %s142, %s156
      %p158 = scmp.eq.s32.totalorder %s34, 0
      %p159 = por %p157, %p158
      %s160 = ssub.s32 %s35, %s47
      %s161 = ssub.s32 %s36, %s43
      %s162 = sor.u32 %s160, %s161
      %p163 = scmp.eq.s32.totalorder %s162, 0
      %s165 = sadd.s32 %s164, 1
      %s166 = scalar_select %p163, %s164, %s165
      %p169 = pneg %p163
      %p170 = scmp.eq.s32.totalorder %s28, 1
      %p171 = por %p169, %p170
      %p172 = scmp.ne.s32.totalorder %s164, %s167
      %p173 = scmp.eq.s32.totalorder %s28, 0
      %p174 = por %p172, %p173
      %p175 = scmp.ne.s32.totalorder %s164, %s167
      %p176 = scmp.eq.s32.totalorder %s33, 1
      %p177 = por %p175, %p176
      %p178 = scmp.ne.s32.totalorder %s167, %s168
      %p179 = scmp.eq.s32.totalorder %s33, 0
      %p180 = por %p178, %p179
      %p181 = scmp.ne.s32.totalorder %s167, %s168
      %p182 = scmp.eq.s32.totalorder %s34, 1
      %p183 = por %p181, %p182
      %p185 = scmp.ne.s32.totalorder %s168, %s184
      %p186 = scmp.eq.s32.totalorder %s34, 0
      %p187 = por %p185, %p186
      %s188 = ssub.s32 %s35, %s47
      %s189 = ssub.s32 %s36, %s43
      %s190 = sor.u32 %s188, %s189
      %p191 = scmp.eq.s32.totalorder %s190, 0
      %s193 = sadd.s32 %s192, 1
      %s194 = scalar_select %p191, %s192, %s193
      %p197 = pneg %p191
      %p198 = scmp.eq.s32.totalorder %s28, 1
      %p199 = por %p197, %p198
      %p200 = scmp.ne.s32.totalorder %s192, %s195
      %p201 = scmp.eq.s32.totalorder %s28, 0
      %p202 = por %p200, %p201
      %p203 = scmp.ne.s32.totalorder %s192, %s195
      %p204 = scmp.eq.s32.totalorder %s33, 1
      %p205 = por %p203, %p204
      %p206 = scmp.ne.s32.totalorder %s195, %s196
      %p207 = scmp.eq.s32.totalorder %s33, 0
      %p208 = por %p206, %p207
      %p209 = scmp.ne.s32.totalorder %s195, %s196
      %p210 = scmp.eq.s32.totalorder %s34, 1
      %p211 = por %p209, %p210
      %p213 = scmp.ne.s32.totalorder %s196, %s212
      %p214 = scmp.eq.s32.totalorder %s34, 0
      %p215 = por %p213, %p214
      %s216 = ssub.s32 %s35, %s47
      %s217 = ssub.s32 %s36, %s43
      %s218 = sor.u32 %s216, %s217
      %p219 = scmp.eq.s32.totalorder %s218, 0
      %s221 = sadd.s32 %s220, 1
      %s222 = scalar_select %p219, %s220, %s221
      %p225 = pneg %p219
      %p226 = scmp.eq.s32.totalorder %s28, 1
      %p227 = por %p225, %p226
      %p228 = scmp.ne.s32.totalorder %s220, %s223
      %p229 = scmp.eq.s32.totalorder %s28, 0
      %p230 = por %p228, %p229
      %p231 = scmp.ne.s32.totalorder %s220, %s223
      %p232 = scmp.eq.s32.totalorder %s33, 1
      %p233 = por %p231, %p232
      %p234 = scmp.ne.s32.totalorder %s223, %s224
      %p235 = scmp.eq.s32.totalorder %s33, 0
      %p236 = por %p234, %p235
      %p237 = scmp.ne.s32.totalorder %s223, %s224
      %p238 = scmp.eq.s32.totalorder %s34, 1
      %p239 = por %p237, %p238
      %p241 = scmp.ne.s32.totalorder %s224, %s240
      %p242 = scmp.eq.s32.totalorder %s34, 0
      %p243 = por %p241, %p242
      %s244 = ssub.s32 %s35, %s47
      %s245 = ssub.s32 %s36, %s43
      %s246 = sor.u32 %s244, %s245
      %p247 = scmp.eq.s32.totalorder %s246, 0
      %s249 = sadd.s32 %s248, 1
      %s250 = scalar_select %p247, %s248, %s249
      %p253 = pneg %p247
      %p254 = scmp.eq.s32.totalorder %s28, 1
      %p255 = por %p253, %p254
      %p256 = scmp.ne.s32.totalorder %s248, %s251
      %p257 = scmp.eq.s32.totalorder %s28, 0
      %p258 = por %p256, %p257
      %p259 = scmp.ne.s32.totalorder %s248, %s251
      %p260 = scmp.eq.s32.totalorder %s33, 1
      %p261 = por %p259, %p260
      %p262 = scmp.ne.s32.totalorder %s251, %s252
      %p263 = scmp.eq.s32.totalorder %s33, 0
      %p264 = por %p262, %p263
      %p265 = scmp.ne.s32.totalorder %s251, %s252
      %p266 = scmp.eq.s32.totalorder %s34, 1
      %p267 = por %p265, %p266
      %p269 = scmp.ne.s32.totalorder %s252, %s268
      %p270 = scmp.eq.s32.totalorder %s34, 0
      %p271 = por %p269, %p270
      %p272 = scmp.le.s32.totalorder 1, %s28
      %p273 = scmp.lt.s32.totalorder %s28, 3
      %p274 = pnand %p272, %p273
      %p275 = pneg %p274
      // Predicated region
      $region9: #{tpu_custom_call.1} parent=5 // pred_check
        _
      $region10: #{tpu_custom_call.1} parent=5 // pred_check_branch
        %277 = sbr.rel (%p274) target = $region12
      $region11: #{tpu_custom_call.1} parent=5 // pred_region
        %s278 = ssub.s32 %s28, 1
        // Predicated region
        $region13: #{tpu_custom_call.1} parent=11 // pred_check
          %p279 = pneg %p89
        $region14: #{tpu_custom_call.1} parent=11 // pred_check_branch
          %281 = sbr.rel (%p279) target = $region16
        $region15: #{tpu_custom_call.1} parent=11 // pred_region
          _
        $region16: #{tpu_custom_call.1} parent=11 // pred_fallthru
          _
        // Predicated region
        $region17: #{tpu_custom_call.1} parent=11 // pred_check
          %p282 = pneg %p110
        $region18: #{tpu_custom_call.1} parent=11 // pred_check_branch
          %284 = sbr.rel (%p282) target = $region20
        $region19: #{tpu_custom_call.1} parent=11 // pred_region
          %s286 = ssub.s32 16, 16
          %287 = vsyncadd [#allocation6], %s286
          %s289 = sshll.u32 [#allocation5], 4
          %s290 = int_to_ptr.vmem [resolvable:$true] %s289
          %292 = dma.hbm_to_vmem [thread:$0]  %s2, 16, %s290, [#allocation6]
        $region20: #{tpu_custom_call.1} parent=11 // pred_fallthru
          _
        // Predicated region
        $region21: #{tpu_custom_call.1} parent=11 // pred_check
          %p293 = pneg %p131
        $region22: #{tpu_custom_call.1} parent=11 // pred_check_branch
          %295 = sbr.rel (%p293) target = $region24
        $region23: #{tpu_custom_call.1} parent=11 // pred_region
          %s297 = ssub.s32 1024, 1024
          %298 = vsyncadd [#allocation6], %s297
          %s299 = sshll.u32 [#allocation7], 4
          %s300 = int_to_ptr.vmem [resolvable:$true] %s299
          %305 = dma.hbm_to_vmem [thread:$0]  %s3, 1024, %s300, [#allocation6], 128, 128, 8
        $region24: #{tpu_custom_call.1} parent=11 // pred_fallthru
          _
        // Predicated region
        $region25: #{tpu_custom_call.1} parent=11 // pred_check
          %p306 = pneg %p152
        $region26: #{tpu_custom_call.1} parent=11 // pred_check_branch
          %308 = sbr.rel (%p306) target = $region28
        $region27: #{tpu_custom_call.1} parent=11 // pred_region
          _
        $region28: #{tpu_custom_call.1} parent=11 // pred_fallthru
          _
      $region12: #{tpu_custom_call.1} parent=5 // pred_fallthru
        _
      %p309 = scmp.lt.s32.totalorder %s28, 2
      // Predicated region
      $region29: #{tpu_custom_call.1} parent=5 // pred_check
        %p310 = pneg %p309
      $region30: #{tpu_custom_call.1} parent=5 // pred_check_branch
        %312 = sbr.rel (%p310) target = $region32
      $region31: #{tpu_custom_call.1} parent=5 // pred_region
        // Predicated region
        $region33: #{tpu_custom_call.1} parent=31 // pred_check
          %p313 = pneg %p62
        $region34: #{tpu_custom_call.1} parent=31 // pred_check_branch
          %315 = sbr.rel (%p313) target = $region36
        $region35: #{tpu_custom_call.1} parent=31 // pred_region
          %s316 = sand.u32 %s52, 1
          %s317 = scalar_lea.sflag [#allocation3], %s316
          %s318 = sand.u32 %s52, 1
          %s319 = smul.addr %s318, 16
          %s320 = scalar_lea.vmem [#allocation2], %s319
          %s321 = smul.u32 2, %s36
          %s323 = ssub.s32 256, 256
          %324 = vsyncadd %s317, %s323
          %s325 = smul.addr %s35, 2
          %s326 = sadd.s32 %s321, %s325
          %s327 = smul.addr %s326, 128
          %s328 = scalar_lea.hbm %s0, %s327
          %s329 = sshll.u32 %s320, 4
          %s330 = int_to_ptr.vmem [resolvable:$true] %s329
          %335 = dma.hbm_to_vmem [thread:$0]  %s328, 256, %s330, %s317, 128, 128, 8
        $region36: #{tpu_custom_call.1} parent=31 // pred_fallthru
          _
      $region32: #{tpu_custom_call.1} parent=5 // pred_fallthru
        _
      %p336 = scmp.le.s32.totalorder 1, %s28
      %p337 = scmp.lt.s32.totalorder %s28, 3
      %p338 = pnand %p336, %p337
      %p339 = pneg %p338
      // Predicated region
      $region37: #{tpu_custom_call.1} parent=5 // pred_check
        _
      $region38: #{tpu_custom_call.1} parent=5 // pred_check_branch
        %341 = sbr.rel (%p338) target = $region40
      $region39: #{tpu_custom_call.1} parent=5 // pred_region
        %s342 = ssub.s32 %s28, 1
        %s343 = sand.u32 %s55, 1
        %s344 = scalar_lea.sflag [#allocation3], %s343
        %s345 = sand.u32 %s55, 1
        %s346 = smul.addr %s345, 16
        %s347 = scalar_lea.vmem [#allocation2], %s346
        // Predicated region
        $region41: #{tpu_custom_call.1} parent=39 // pred_check
          %p348 = pneg %p68
        $region42: #{tpu_custom_call.1} parent=39 // pred_check_branch
          %350 = sbr.rel (%p348) target = $region44
        $region43: #{tpu_custom_call.1} parent=39 // pred_region
          %351 = dma.done %s344, 256
        $region44: #{tpu_custom_call.1} parent=39 // pred_fallthru
          _
        // Predicated region
        $region45: #{tpu_custom_call.1} parent=39 // pred_check
          %p352 = pneg %p110
        $region46: #{tpu_custom_call.1} parent=39 // pred_check_branch
          %354 = sbr.rel (%p352) target = $region48
        $region47: #{tpu_custom_call.1} parent=39 // pred_region
          %355 = dma.done [#allocation6], 16
        $region48: #{tpu_custom_call.1} parent=39 // pred_fallthru
          _
        // Predicated region
        $region49: #{tpu_custom_call.1} parent=39 // pred_check
          %p356 = pneg %p131
        $region50: #{tpu_custom_call.1} parent=39 // pred_check_branch
          %358 = sbr.rel (%p356) target = $region52
        $region51: #{tpu_custom_call.1} parent=39 // pred_region
          %359 = dma.done [#allocation6], 1024
        $region52: #{tpu_custom_call.1} parent=39 // pred_fallthru
          _
        %s360 = sand.u32 %s55, 1
        %s361 = scalar_lea.sflag [#allocation3], %s360
        %s362 = sand.u32 %s55, 1
        %s363 = smul.addr %s362, 16
        %s364 = scalar_lea.vmem [#allocation2], %s363
        %p365 = pneg %p68
        %p366 = pneg %p65
        %p367 = pneg %p89
        %p368 = pneg %p86
        %p369 = pneg %p110
        %p370 = pneg %p107
        %p371 = pneg %p131
        %p372 = pneg %p128
        %p373 = pneg %p152
        %p374 = pneg %p149
        %p375 = pneg %p180
        %p376 = pneg %p177
        %s377 = sand.u32 %s167, 1
        %s378 = scalar_lea.sflag [#allocation4], %s377
        %s379 = sand.u32 %s167, 1
        %s380 = smul.addr %s379, 8
        %s381 = scalar_lea.vmem [#allocation8], %s380
        %p382 = pneg %p208
        %p383 = pneg %p205
        %s384 = sand.u32 %s33, 1
        %s385 = scalar_lea.sflag [#allocation10], %s384
        %s386 = sand.u32 %s195, 1
        %s387 = smul.addr %s386, 32
        %s388 = scalar_lea.vmem [#allocation9], %s387
        %p389 = pneg %p236
        %p390 = pneg %p233
        %s391 = sand.u32 %s33, 1
        %s392 = scalar_lea.sflag [#allocation10], %s391
        %s393 = sand.u32 %s223, 1
        %s394 = smul.addr %s393, 32
        %s395 = scalar_lea.vmem [#allocation11], %s394
        %p396 = pneg %p264
        %p397 = pneg %p261
        %s398 = sand.u32 %s251, 1
        %s399 = scalar_lea.sflag [#allocation13], %s398
        %s400 = sand.u32 %s251, 1
        %s401 = smul.addr %s400, 32
        %s402 = scalar_lea.vmem [#allocation12], %s401
        %s403 = smul.u32 2, %s38
        %s404 = smul.u32 2, %s38
        %s405 = smul.u32 2, %s38
        %s406 = smul.u32 2, %s38
        %s407 = smul.u32 2, %s38
        %v409 = vld [vmem:[%s347] sm:$0xff]
        %v410 = vld [vmem:[%s347 + $0x8] sm:$0xff]
        %v411 = vld [vmem:[%s1] sm:$0x1]
        %v412 = vld [vmem:[#allocation5] sm:$0x1]
        %vm413 = vcmask 523264
        %v414 = vsel %vm413, %v409, 0.0
        %415 = vadd.xlane.f32.xlu0 %v414
        %v416 = vpop.xlane.xlu0 %415
        %v417 = vsel %vm413, %v410, 0.0
        %418 = vadd.xlane.f32.xlu0 %v417
        %v419 = vpop.xlane.xlu0 %418
        %v420 = vrcp.pop 64.0
        %v421 = vmul.f32 %v416, %v420
        %v422 = vmul.f32 %v419, %v420
        %v423 = vsub.f32 %v409, %v421
        %v424 = vsub.f32 %v410, %v422
        %v425 = vmul.f32 %v423, %v423
        %v426 = vmul.f32 %v424, %v424
        %v427 = vsel %vm413, %v425, 0.0
        %428 = vadd.xlane.f32.xlu0 %v427
        %v429 = vpop.xlane.xlu0 %428
        %v430 = vsel %vm413, %v426, 0.0
        %431 = vadd.xlane.f32.xlu0 %v430
        %v432 = vpop.xlane.xlu0 %431
        %v433 = vmul.f32 %v429, %v420
        %v434 = vmul.f32 %v432, %v420
        %v435 = vadd.f32 %v433, 1e-05
        %v436 = vadd.f32 %v434, 1e-05
        %v437 = vrsqrt.pop %v435
        %v438 = vrsqrt.pop %v436
        %v439 = vmul.f32 %v423, %v437
        %v440 = vmul.f32 %v424, %v438
        %v442 = vlaneseq
        %v443 = vshrl.u32 %v442, 7
        %v444 = vsub.s32 0, %v443
        %v445 = vrot.slane %v411, %v444
        %v447 = vmul.f32 %v439, %v445
        %v448 = vmul.f32 %v440, %v445
        %v450 = vlaneseq
        %v451 = vshrl.u32 %v450, 7
        %v452 = vsub.s32 0, %v451
        %v453 = vrot.slane %v412, %v452
        %v455 = vadd.f32 %v447, %v453
        %v456 = vadd.f32 %v448, %v453
        %v457 = vpack.c.bf16 %v456, %v455
        %v459 = vunpack.c.l.b16 %v457
        %v460 = vunpack.c.h.b16 %v457
        %v461 = vpack.c.b16 %v459, %v459
        %v462 = vpack.c.b16 %v460, %v460
        %vm465 = vcmask 519168
        %466 = vst.msk [vmem:[%s381] sm:$0xf] %vm465, %v461
        %467 = vst.msk [vmem:[%s381 + $0x4] sm:$0xf] %vm465, %v462
        %v468 = vld [vmem:[#allocation7] sm:$0xff]
        %v469 = vld [vmem:[#allocation7 + $0x8] sm:$0xff]
        %v470 = vld [vmem:[#allocation7 + $0x10] sm:$0xff]
        %v471 = vld [vmem:[#allocation7 + $0x18] sm:$0xff]
        %v472 = vld [vmem:[#allocation7 + $0x20] sm:$0xff]
        %v473 = vld [vmem:[#allocation7 + $0x28] sm:$0xff]
        %v474 = vld [vmem:[#allocation7 + $0x30] sm:$0xff]
        %v475 = vld [vmem:[#allocation7 + $0x38] sm:$0xff]
        %v476 = vld [vmem:[%s4] sm:$0x3]
        %v478 = vlaneseq
        %v479 = vshrl.u32 %v478, 7
        %v480 = vsub.s32 0, %v479
        %v481 = vrot.slane %v476, %v480
        %v482 = vlaneseq
        %v483 = vshrl.u32 %v482, 7
        %v484 = vsub.s32 1, %v483
        %v485 = vrot.slane %v476, %v484
        %v496 = vunpack.c.l.b16 %v468
        %v497 = vunpack.c.h.b16 %v468
        %v498 = vunpack.c.l.b16 %v469
        %v499 = vunpack.c.h.b16 %v469
        %v500 = vunpack.c.l.b16 %v470
        %v501 = vunpack.c.h.b16 %v470
        %v502 = vunpack.c.l.b16 %v471
        %v503 = vunpack.c.h.b16 %v471
        %v504 = vunpack.c.l.b16 %v472
        %v505 = vunpack.c.h.b16 %v472
        %v506 = vunpack.c.l.b16 %v473
        %v507 = vunpack.c.h.b16 %v473
        %v508 = vunpack.c.l.b16 %v474
        %v509 = vunpack.c.h.b16 %v474
        %v510 = vunpack.c.l.b16 %v475
        %v511 = vunpack.c.h.b16 %v475
        %v512 = vpack.c.b16 %v498, %v496
        %v513 = vpack.c.b16 %v499, %v497
        %v514 = vpack.c.b16 %v502, %v500
        %v515 = vpack.c.b16 %v503, %v501
        %v516 = vpack.c.b16 %v506, %v504
        %v517 = vpack.c.b16 %v507, %v505
        %v518 = vpack.c.b16 %v510, %v508
        %v519 = vpack.c.b16 %v511, %v509
        %v529 = vsel %vm413, %v457, 0
        %531 = vmatprep.subr.bf16.mxu0 0
        %532 = vmatpush1.bf16.msra.mxu0 0
        %533 = vmatprep.subr.bf16.mxu0 0
        %534 = vmatpush1.bf16.msra.mxu0 0
        %535 = vmatprep.subr.bf16.mxu0 0
        %536 = vmatpush1.bf16.msra.mxu0 0
        %537 = vmatprep.subr.bf16.mxu0 0
        %538 = vmatpush1.bf16.msra.mxu0 0
        %539 = vmatprep.subr.bf16.mxu0 %v519
        %540 = vmatpush1.bf16.msra.mxu0 %v518
        %541 = vmatprep.subr.bf16.mxu0 %v517
        %542 = vmatpush1.bf16.msra.mxu0 %v516
        %543 = vmatprep.subr.bf16.mxu0 %v515
        %544 = vmatpush1.bf16.msra.mxu0 %v514
        %545 = vmatprep.subr.bf16.mxu0 %v513
        %546 = vmatpush1.bf16.msra.mxu0 %v512
        %547 = vmatprep.subr.bf16.mxu0 0
        %548 = vmatpush2.bf16.msra.mxu0 0
        %549 = vmatprep.subr.bf16.mxu0 0
        %550 = vmatpush2.bf16.msra.mxu0 0
        %551 = vmatprep.subr.bf16.mxu0 0
        %552 = vmatpush2.bf16.msra.mxu0 0
        %553 = vmatprep.subr.bf16.mxu0 0
        %554 = vmatpush2.bf16.msra.mxu0 0
        %555 = vmatprep.subr.bf16.mxu0 0
        %556 = vmatpush2.bf16.msra.mxu0 0
        %557 = vmatprep.subr.bf16.mxu0 0
        %558 = vmatpush2.bf16.msra.mxu0 0
        %559 = vmatprep.subr.bf16.mxu0 0
        %560 = vmatpush2.bf16.msra.mxu0 0
        %561 = vmatprep.subr.bf16.mxu0 0
        %562 = vmatpush2.bf16.msra.mxu0 0
        %563 = vmatprep.mubr.bf16.mxu0 0
        %564 = vmatmul.mubr.bf16.gmra.mxu0 %v529
        %v565 = vpop.f32.mrf.mxu0
        %v566 = vadd.f32 %v481, %v565
        %v567 = vpop.f32.mrf.mxu0
        %v568 = vadd.f32 %v485, %v567
        %v569 = vpop.f32.mrf.mxu0
        %v570 = vadd.f32 %v481, %v569
        %v571 = vpop.f32.mrf.mxu0
        %v572 = vadd.f32 %v485, %v571
        %573 = vdwg.mxu0
        %v574 = vmul.f32 %v566, 0.25
        %v575 = vmul.f32 %v570, 0.25
        %v576 = vpack.c.bf16 %v575, %v574
        %v578 = vunpack.c.l.b16 %v576
        %v579 = vunpack.c.h.b16 %v576
        %v580 = vpack.c.b16 %v578, %v578
        %v581 = vpack.c.b16 %v579, %v579
        %vm584 = vcmask 125952
        %585 = vst.msk [vmem:[%s388] sm:$0xf] %vm584, %v580
        %586 = vst.msk [vmem:[%s388 + $0x4] sm:$0xf] %vm584, %v581
        %v587 = vpack.c.bf16 %v570, %v566
        %v589 = vunpack.c.l.b16 %v587
        %v590 = vunpack.c.h.b16 %v587
        %v591 = vpack.c.b16 %v589, %v589
        %v592 = vpack.c.b16 %v590, %v590
        %593 = vrot.lane.b32.xlu0 %v591, 64
        %v594 = vpop.permute.xlu0 %593
        %595 = vrot.lane.b32.xlu0 %v592, 64
        %v596 = vpop.permute.xlu0 %595
        %599 = vst.msk [vmem:[%s395] sm:$0xf] %vm584, %v594
        %600 = vst.msk [vmem:[%s395 + $0x4] sm:$0xf] %vm584, %v596
        %v601 = vpack.c.bf16 %v572, %v568
        %v603 = vunpack.c.l.b16 %v601
        %v604 = vunpack.c.h.b16 %v601
        %v605 = vpack.c.b16 %v603, %v603
        %v606 = vpack.c.b16 %v604, %v604
        %609 = vst.msk [vmem:[%s402] sm:$0xf] %vm584, %v605
        %610 = vst.msk [vmem:[%s402 + $0x4] sm:$0xf] %vm584, %v606
        %611 = vrot.lane.b32.xlu0 %v580, 112
        %v612 = vpop.permute.xlu0 %611
        %613 = vrot.lane.b32.xlu0 %v581, 112
        %v614 = vpop.permute.xlu0 %613
        %s617 = scalar_lea.vmem %s388, 8 [#allocation9]
        %618 = vst.msk [vmem:[%s617] sm:$0xf] %vm584, %v612
        %619 = vst.msk [vmem:[%s617 + $0x4] sm:$0xf] %vm584, %v614
        %620 = vrot.lane.b32.xlu0 %v591, 48
        %v621 = vpop.permute.xlu0 %620
        %622 = vrot.lane.b32.xlu0 %v592, 48
        %v623 = vpop.permute.xlu0 %622
        %s626 = scalar_lea.vmem %s395, 8 [#allocation11]
        %627 = vst.msk [vmem:[%s626] sm:$0xf] %vm584, %v621
        %628 = vst.msk [vmem:[%s626 + $0x4] sm:$0xf] %vm584, %v623
        %629 = vrot.lane.b32.xlu0 %v605, 112
        %v630 = vpop.permute.xlu0 %629
        %631 = vrot.lane.b32.xlu0 %v606, 112
        %v632 = vpop.permute.xlu0 %631
        %s635 = scalar_lea.vmem %s402, 8 [#allocation12]
        %636 = vst.msk [vmem:[%s635] sm:$0xf] %vm584, %v630
        %637 = vst.msk [vmem:[%s635 + $0x4] sm:$0xf] %vm584, %v632
        %638 = vrot.lane.b32.xlu0 %v580, 96
        %v639 = vpop.permute.xlu0 %638
        %640 = vrot.lane.b32.xlu0 %v581, 96
        %v641 = vpop.permute.xlu0 %640
        %s644 = scalar_lea.vmem %s388, 16 [#allocation9]
        %645 = vst.msk [vmem:[%s644] sm:$0xf] %vm584, %v639
        %646 = vst.msk [vmem:[%s644 + $0x4] sm:$0xf] %vm584, %v641
        %647 = vrot.lane.b32.xlu0 %v591, 32
        %v648 = vpop.permute.xlu0 %647
        %649 = vrot.lane.b32.xlu0 %v592, 32
        %v650 = vpop.permute.xlu0 %649
        %s653 = scalar_lea.vmem %s395, 16 [#allocation11]
        %654 = vst.msk [vmem:[%s653] sm:$0xf] %vm584, %v648
        %655 = vst.msk [vmem:[%s653 + $0x4] sm:$0xf] %vm584, %v650
        %656 = vrot.lane.b32.xlu0 %v605, 96
        %v657 = vpop.permute.xlu0 %656
        %658 = vrot.lane.b32.xlu0 %v606, 96
        %v659 = vpop.permute.xlu0 %658
        %s662 = scalar_lea.vmem %s402, 16 [#allocation12]
        %663 = vst.msk [vmem:[%s662] sm:$0xf] %vm584, %v657
        %664 = vst.msk [vmem:[%s662 + $0x4] sm:$0xf] %vm584, %v659
        %665 = vrot.lane.b32.xlu0 %v580, 80
        %v666 = vpop.permute.xlu0 %665
        %667 = vrot.lane.b32.xlu0 %v581, 80
        %v668 = vpop.permute.xlu0 %667
        %s671 = scalar_lea.vmem %s388, 24 [#allocation9]
        %672 = vst.msk [vmem:[%s671] sm:$0xf] %vm584, %v666
        %673 = vst.msk [vmem:[%s671 + $0x4] sm:$0xf] %vm584, %v668
        %674 = vrot.lane.b32.xlu0 %v591, 16
        %v675 = vpop.permute.xlu0 %674
        %676 = vrot.lane.b32.xlu0 %v592, 16
        %v677 = vpop.permute.xlu0 %676
        %s680 = scalar_lea.vmem %s395, 24 [#allocation11]
        %681 = vst.msk [vmem:[%s680] sm:$0xf] %vm584, %v675
        %682 = vst.msk [vmem:[%s680 + $0x4] sm:$0xf] %vm584, %v677
        %683 = vrot.lane.b32.xlu0 %v605, 80
        %v684 = vpop.permute.xlu0 %683
        %685 = vrot.lane.b32.xlu0 %v606, 80
        %v686 = vpop.permute.xlu0 %685
        %s689 = scalar_lea.vmem %s402, 24 [#allocation12]
        %690 = vst.msk [vmem:[%s689] sm:$0xf] %vm584, %v684
        %691 = vst.msk [vmem:[%s689 + $0x4] sm:$0xf] %vm584, %v686
        %s692 = sand.u32 %s167, 1
        %s693 = scalar_lea.sflag [#allocation4], %s692
        %s694 = sand.u32 %s167, 1
        %s695 = smul.addr %s694, 8
        %s696 = scalar_lea.vmem [#allocation8], %s695
        %s697 = sand.u32 %s33, 1
        %s698 = scalar_lea.sflag [#allocation10], %s697
        %s699 = sand.u32 %s195, 1
        %s700 = smul.addr %s699, 32
        %s701 = scalar_lea.vmem [#allocation9], %s700
        %s702 = sand.u32 %s33, 1
        %s703 = scalar_lea.sflag [#allocation10], %s702
        %s704 = sand.u32 %s223, 1
        %s705 = smul.addr %s704, 32
        %s706 = scalar_lea.vmem [#allocation11], %s705
        %s707 = sand.u32 %s251, 1
        %s708 = scalar_lea.sflag [#allocation13], %s707
        %s709 = sand.u32 %s251, 1
        %s710 = smul.addr %s709, 32
        %s711 = scalar_lea.vmem [#allocation12], %s710
        // Predicated region
        $region53: #{tpu_custom_call.1} parent=39 // pred_check
          %p712 = pneg %p177
        $region54: #{tpu_custom_call.1} parent=39 // pred_check_branch
          %714 = sbr.rel (%p712) target = $region56
        $region55: #{tpu_custom_call.1} parent=39 // pred_region
          %s715 = smul.u32 2, %s38
          %s717 = ssub.s32 128, 128
          %718 = vsyncadd %s693, %s717
          %s719 = smul.addr %s37, 2
          %s720 = sadd.s32 %s715, %s719
          %s721 = smul.addr %s720, 64
          %s722 = scalar_lea.hbm %s5, %s721
          %s723 = sshll.u32 %s696, 4
          %s724 = int_to_ptr.vmem [resolvable:$true] %s723
          %729 = dma.vmem_to_hbm [thread:$0]  %s724, 128, %s722, %s693, 64, 64, 4
        $region56: #{tpu_custom_call.1} parent=39 // pred_fallthru
          _
        // Predicated region
        $region57: #{tpu_custom_call.1} parent=39 // pred_check
          %p730 = pneg %p205
        $region58: #{tpu_custom_call.1} parent=39 // pred_check_branch
          %732 = sbr.rel (%p730) target = $region60
        $region59: #{tpu_custom_call.1} parent=39 // pred_region
          %s733 = smul.u32 2, %s38
          %s735 = ssub.s32 512, 512
          %736 = vsyncadd %s698, %s735
          %s737 = smul.addr %s37, 8
          %s738 = sadd.s32 %s733, %s737
          %s739 = smul.addr %s738, 64
          %s740 = scalar_lea.hbm %s6, %s739
          %s741 = sshll.u32 %s701, 4
          %s742 = int_to_ptr.vmem [resolvable:$true] %s741
          %747 = dma.vmem_to_hbm [thread:$0]  %s742, 512, %s740, %s698, 64, 64, 4
        $region60: #{tpu_custom_call.1} parent=39 // pred_fallthru
          _
        // Predicated region
        $region61: #{tpu_custom_call.1} parent=39 // pred_check
          %p748 = pneg %p233
        $region62: #{tpu_custom_call.1} parent=39 // pred_check_branch
          %750 = sbr.rel (%p748) target = $region64
        $region63: #{tpu_custom_call.1} parent=39 // pred_region
          %s751 = smul.u32 2, %s38
          %s753 = ssub.s32 512, 512
          %754 = vsyncadd %s703, %s753
          %s755 = smul.addr %s37, 8
          %s756 = sadd.s32 %s751, %s755
          %s757 = smul.addr %s756, 64
          %s758 = scalar_lea.hbm %s7, %s757
          %s759 = sshll.u32 %s706, 4
          %s760 = int_to_ptr.vmem [resolvable:$true] %s759
          %765 = dma.vmem_to_hbm [thread:$0]  %s760, 512, %s758, %s703, 64, 64, 4
        $region64: #{tpu_custom_call.1} parent=39 // pred_fallthru
          _
        // Predicated region
        $region65: #{tpu_custom_call.1} parent=39 // pred_check
          %p766 = pneg %p261
        $region66: #{tpu_custom_call.1} parent=39 // pred_check_branch
          %768 = sbr.rel (%p766) target = $region68
        $region67: #{tpu_custom_call.1} parent=39 // pred_region
          %s769 = smul.u32 2, %s38
          %s771 = ssub.s32 512, 512
          %772 = vsyncadd %s708, %s771
          %s773 = smul.addr %s37, 8
          %s774 = sadd.s32 %s769, %s773
          %s775 = smul.addr %s774, 64
          %s776 = scalar_lea.hbm %s8, %s775
          %s777 = sshll.u32 %s711, 4
          %s778 = int_to_ptr.vmem [resolvable:$true] %s777
          %783 = dma.vmem_to_hbm [thread:$0]  %s778, 512, %s776, %s708, 64, 64, 4
        $region68: #{tpu_custom_call.1} parent=39 // pred_fallthru
          _
      $region40: #{tpu_custom_call.1} parent=5 // pred_fallthru
        _
      %p784 = scmp.le.s32.totalorder 2, %s28
      // Predicated region
      $region69: #{tpu_custom_call.1} parent=5 // pred_check
        %p785 = pneg %p784
      $region70: #{tpu_custom_call.1} parent=5 // pred_check_branch
        %787 = sbr.rel (%p785) target = $region72
      $region71: #{tpu_custom_call.1} parent=5 // pred_region
        %s788 = ssub.s32 %s28, 2
        // Predicated region
        $region73: #{tpu_custom_call.1} parent=71 // pred_check
          %p789 = pneg %p183
        $region74: #{tpu_custom_call.1} parent=71 // pred_check_branch
          %791 = sbr.rel (%p789) target = $region76
        $region75: #{tpu_custom_call.1} parent=71 // pred_region
          %s792 = sand.u32 %s168, 1
          %s793 = scalar_lea.sflag [#allocation4], %s792
          %s794 = sand.u32 %s168, 1
          %s795 = smul.addr %s794, 8
          %s796 = scalar_lea.vmem [#allocation8], %s795
          %797 = dma.done %s793, 128
        $region76: #{tpu_custom_call.1} parent=71 // pred_fallthru
          _
        // Predicated region
        $region77: #{tpu_custom_call.1} parent=71 // pred_check
          %p798 = pneg %p211
        $region78: #{tpu_custom_call.1} parent=71 // pred_check_branch
          %800 = sbr.rel (%p798) target = $region80
        $region79: #{tpu_custom_call.1} parent=71 // pred_region
          %s801 = sand.u32 %s34, 1
          %s802 = scalar_lea.sflag [#allocation10], %s801
          %s803 = sand.u32 %s196, 1
          %s804 = smul.addr %s803, 32
          %s805 = scalar_lea.vmem [#allocation9], %s804
          %806 = dma.done %s802, 512
        $region80: #{tpu_custom_call.1} parent=71 // pred_fallthru
          _
        // Predicated region
        $region81: #{tpu_custom_call.1} parent=71 // pred_check
          %p807 = pneg %p239
        $region82: #{tpu_custom_call.1} parent=71 // pred_check_branch
          %809 = sbr.rel (%p807) target = $region84
        $region83: #{tpu_custom_call.1} parent=71 // pred_region
          %s810 = sand.u32 %s34, 1
          %s811 = scalar_lea.sflag [#allocation10], %s810
          %s812 = sand.u32 %s224, 1
          %s813 = smul.addr %s812, 32
          %s814 = scalar_lea.vmem [#allocation11], %s813
          %815 = dma.done %s811, 512
        $region84: #{tpu_custom_call.1} parent=71 // pred_fallthru
          _
        // Predicated region
        $region85: #{tpu_custom_call.1} parent=71 // pred_check
          %p816 = pneg %p267
        $region86: #{tpu_custom_call.1} parent=71 // pred_check_branch
          %818 = sbr.rel (%p816) target = $region88
        $region87: #{tpu_custom_call.1} parent=71 // pred_region
          %s819 = sand.u32 %s252, 1
          %s820 = scalar_lea.sflag [#allocation13], %s819
          %s821 = sand.u32 %s252, 1
          %s822 = smul.addr %s821, 32
          %s823 = scalar_lea.vmem [#allocation12], %s822
          %824 = dma.done %s820, 512
        $region88: #{tpu_custom_call.1} parent=71 // pred_fallthru
          _
      $region72: #{tpu_custom_call.1} parent=5 // pred_fallthru
        _
    $region6: #{tpu_custom_call.1} parent=1 // loop_footer
      %s32 = sadd.s32 1, %s28
    $region7: #{tpu_custom_call.1} parent=1 // loop_footer_branch
      %27 = sbr.rel target = $region3
    $region8: #{tpu_custom_call.1} parent=1 // loop_exit
      _
    %825 = vsyncpa [#allocation3], 1
    %s826 = scalar_lea.sflag [#allocation3], 1
    %827 = vsyncpa %s826, 1
    %828 = vsyncpa [#allocation6], 1
    %829 = vsyncpa [#allocation4], 1
    %s830 = scalar_lea.sflag [#allocation4], 1
    %831 = vsyncpa %s830, 1
    %832 = vsyncpa [#allocation10], 1
    %s833 = scalar_lea.sflag [#allocation10], 1
    %834 = vsyncpa %s833, 1
    %835 = vsyncpa [#allocation13], 1
    %s836 = scalar_lea.sflag [#allocation13], 1
    %837 = vsyncpa %s836, 1

</llo_original>
